<compile_context>
chip_gen: v6e
topology: v6e:2x2x1
jax: 0.10.0
libtpu: 0.0.40
codegen_flags: <defaults>
</compile_context>

<pallas_src>
import functools

import jax
import jax.numpy as jnp
from jax.experimental import pallas as pl
from jax.experimental.pallas import tpu as pltpu


# -----------------------------------------------------------------------------
# Kernels
# -----------------------------------------------------------------------------
def _scale_skip_kernel_row_params(x_ref, y_ref, p_ref, o_ref):
    """Layout A. Data tiles (rt, ct); p_ref is (rt, 3) f32:
    lane 0 = x_scale, lane 1 = y_scale, lane 2 = folded bias (per row)."""
    x = x_ref[...].astype(jnp.float32)
    y = y_ref[...].astype(jnp.float32)
    p = p_ref[...]
    out = x * p[:, 0:1] + y * p[:, 1:2] + p[:, 2:3]
    o_ref[...] = out.astype(o_ref.dtype)


def _scale_skip_kernel_col_params(x_ref, y_ref, p_ref, o_ref):
    """Layout B. Data tiles (rt, ct); p_ref is (3, ct) f32:
    sublane 0 = x_scale, 1 = y_scale, 2 = folded bias (per output element)."""
    x = x_ref[...].astype(jnp.float32)
    y = y_ref[...].astype(jnp.float32)
    p = p_ref[...]
    out = x * p[0:1, :] + y * p[1:2, :] + p[2:3, :]
    o_ref[...] = out.astype(o_ref.dtype)


# -----------------------------------------------------------------------------
# Tiling helpers
# -----------------------------------------------------------------------------
def _sublane_multiple(dtype):
    """Packed-sublane multiple: 8 for 32-bit, 16 for 16-bit, 32 for 8-bit."""
    return max(8, 32 // jnp.dtype(dtype).itemsize)


def _vmem_budget():
    """(max_tile_bytes, vmem_limit_bytes) gated by physical VMEM size."""
    cap = None
    try:
        info = pltpu.get_tpu_info()
        cap = getattr(info, "vmem_capacity_bytes", None)
    except Exception:
        cap = None
    if cap is not None and cap >= 128 * 1024 * 1024:
        # v5e / v6e (128 MiB VMEM): bigger tiles, deeper budget.
        return 8 * 1024 * 1024, 96 * 1024 * 1024
    # v7x (64 MiB VMEM) or unknown: stay conservative.
    return 4 * 1024 * 1024, 48 * 1024 * 1024


def _pick_tiles(rows, cols, itemsize, sub, max_tile_bytes):
    """Jointly pick (row_tile, col_tile): near the byte cap, lane-dense
    (col_tile a 128-multiple or full extent), sublane-aligned (row_tile a
    multiple of `sub` or full extent)."""
    if rows * cols * itemsize <= max_tile_bytes:
        return int(rows), int(cols)                      # whole array, one block
    # Prefer full-extent columns (lane-dense, fewest lane blocks).
    row_budget = max_tile_bytes // (cols * itemsize)
    if row_budget >= sub:
        row_tile = min(rows, (row_budget // sub) * sub)
        return int(row_tile), int(cols)
    # Columns alone exceed the cap even at `sub` rows: tile the lane axis too.
    row_tile = rows if rows <= sub else sub
    col_budget = max_tile_bytes // (row_tile * itemsize)
    col_tile = min(cols, max(128, (col_budget // 128) * 128))
    return int(row_tile), int(col_tile)


# -----------------------------------------------------------------------------
# Wrapper
# -----------------------------------------------------------------------------
@functools.partial(jax.jit, donate_argnums=(0,))
def scale_skip_2d(x, y, x_skipscale, x_skipbias, y_skipscale, y_skipbias):
    """x, y: (B, C, H, W); scale/bias: (1, C, 1, 1). Returns (B, C, H, W)."""
    B, C, H, W = x.shape
    hw = H * W
    itemsize = jnp.dtype(x.dtype).itemsize
    sub = _sublane_multiple(x.dtype)
    max_tile_bytes, vmem_limit = _vmem_budget()

    # Per-channel params: cast to f32 first, then fold the two biases into one
    # (tiny (C,) work in the wrapper; saves a DMA stream + a VPU add/elem).
    xs = x_skipscale.reshape(C).astype(jnp.float32)
    ys = y_skipscale.reshape(C).astype(jnp.float32)
    b = (x_skipbias.astype(jnp.float32) + y_skipbias.astype(jnp.float32)).reshape(C)

    # Layout selection: keep the lane (last) axis dense. Layout B only for
    # small/unaligned spatial extents (keeps the expanded param array tiny).
    use_row_layout = (hw % 128 == 0) or (hw >= 1024)

    if use_row_layout:
        # Layout A: rows = B*C (sublanes), cols = H*W (lanes); per-row params.
        rows, cols = B * C, hw
        x2 = x.reshape(rows, cols)
        y2 = y.reshape(rows, cols)
        params = jnp.stack([xs, ys, b], axis=-1)                    # (C, 3)
        params = jnp.broadcast_to(params[None], (B, C, 3)).reshape(rows, 3)
        row_tile, col_tile = _pick_tiles(rows, cols, itemsize, sub, max_tile_bytes)
        param_spec = pl.BlockSpec((row_tile, 3), lambda i, j: (i, 0))
        kernel = _scale_skip_kernel_row_params
    else:
        # Layout B: rows = B (sublanes), cols = C*H*W (lanes); per-element
        # params broadcast along sublanes.
        rows, cols = B, C * hw
        x2 = x.reshape(rows, cols)
        y2 = y.reshape(rows, cols)
        params = jnp.stack([xs, ys, b], axis=0)                     # (3, C)
        params = jnp.broadcast_to(params[:, :, None], (3, C, hw)).reshape(3, cols)
        row_tile, col_tile = _pick_tiles(rows, cols, itemsize, sub, max_tile_bytes)
        param_spec = pl.BlockSpec((3, col_tile), lambda i, j: (0, j))
        kernel = _scale_skip_kernel_col_params

    grid = (pl.cdiv(rows, row_tile), pl.cdiv(cols, col_tile))
    n_steps = grid[0] * grid[1]
    tile_bytes = row_tile * col_tile * itemsize

    # Optional 3-deep buffering on the pure-streaming data specs: only when
    # there are enough grid steps to pipeline and VMEM leaves headroom
    # (3 streams x 3 buffers x tile + 8 MiB slack).
    data_kwargs = {}
    if (n_steps >= 8 and hasattr(pl, "Buffered")
            and 9 * tile_bytes <= vmem_limit - (8 << 20)):
        data_kwargs = dict(pipeline_mode=pl.Buffered(3))

    data_spec = pl.BlockSpec((row_tile, col_tile), lambda i, j: (i, j),
                             **data_kwargs)

    out2 = pl.pallas_call(
        kernel,
        out_shape=jax.ShapeDtypeStruct((rows, cols), x.dtype),
        grid=grid,
        in_specs=[data_spec, data_spec, param_spec],
        out_specs=data_spec,
        # Reuse x's HBM buffer for the output (x is donated through jit).
        input_output_aliases={0: 0},
        compiler_params=pltpu.CompilerParams(
            dimension_semantics=("parallel", "parallel"),
            vmem_limit_bytes=vmem_limit,
        ),
    )(x2, y2, params)

    return out2.reshape(B, C, H, W)


# -----------------------------------------------------------------------------
# Demo / self-test
# -----------------------------------------------------------------------------
def _trunc_normal(key, shape, mean, std):
    # Deterministic stand-in for nn.init.trunc_normal_ (truncate at +/- 2 std).
    u = jax.random.truncated_normal(key, -2.0, 2.0, shape, dtype=jnp.float32)
    return mean + std * u


if __name__ == "__main__":
    B, C, H, W = 2, 4, 16, 16
    size = 0.01

    key = jax.random.PRNGKey(0)
    kx, ky, k1, k2, k3, k4 = jax.random.split(key, 6)

    x = jax.random.normal(kx, (B, C, H, W), dtype=jnp.float32)
    y = jax.random.normal(ky, (B, C, H, W), dtype=jnp.float32)

    # Parameters per ScaleSkip2D.__init__ / set_weights (deterministic init).
    x_skipscale = _trunc_normal(k1, (1, C, 1, 1), 1.0, size)
    y_skipscale = _trunc_normal(k2, (1, C, 1, 1), 1.0, size)
    y_skipbias = _trunc_normal(k3, (1, C, 1, 1), 0.0, size)
    x_skipbias = _trunc_normal(k4, (1, C, 1, 1), 0.0, size)

    # Pure-JAX reference, computed BEFORE the kernel call since x is donated.
    ref = (x * x_skipscale + x_skipbias) + (y * y_skipscale + y_skipbias)
    ref = jax.block_until_ready(ref)

    out = scale_skip_2d(x, y, x_skipscale, x_skipbias, y_skipscale, y_skipbias)
    out = jax.block_until_ready(out)
    assert out.shape == (B, C, H, W)
    assert jnp.allclose(out, ref, atol=1e-6, rtol=1e-6), "mismatch (layout A)"

    # Second case exercises the small-spatial fallback layout (H*W = 81 < 128).
    H2, W2 = 9, 9
    kx2, ky2 = jax.random.split(jax.random.PRNGKey(1))
    x_s = jax.random.normal(kx2, (B, C, H2, W2), dtype=jnp.float32)
    y_s = jax.random.normal(ky2, (B, C, H2, W2), dtype=jnp.float32)
    ref_s = (x_s * x_skipscale + x_skipbias) + (y_s * y_skipscale + y_skipbias)
    ref_s = jax.block_until_ready(ref_s)
    out_s = scale_skip_2d(x_s, y_s, x_skipscale, x_skipbias,
                          y_skipscale, y_skipbias)
    out_s = jax.block_until_ready(out_s)
    assert out_s.shape == (B, C, H2, W2)
    assert jnp.allclose(out_s, ref_s, atol=1e-6, rtol=1e-6), "mismatch (layout B)"

    print("KERNEL_OK")
</pallas_src>

<mosaic_0001>
module attributes {stable_mosaic.version = 11 : i64} {
  func.func @_scale_skip_kernel_row_params(%arg0: i32, %arg1: i32, %arg2: memref<8x256xf32, #tpu.memory_space<vmem>>, %arg3: memref<8x256xf32, #tpu.memory_space<vmem>>, %arg4: memref<8x3xf32, #tpu.memory_space<vmem>>, %arg5: memref<8x256xf32, #tpu.memory_space<vmem>>) attributes {dimension_semantics = [#tpu.dimension_semantics<parallel>, #tpu.dimension_semantics<parallel>], iteration_bounds = array<i64: 1, 1>, scalar_prefetch = 0 : i64, scratch_operands = 0 : i64, tpu.core_type = #tpu.core_type<tc>, window_params = [{transform_indices = @transform_0, window_bounds = array<i64: 8, 256>}, {transform_indices = @transform_1, window_bounds = array<i64: 8, 256>}, {transform_indices = @transform_2, window_bounds = array<i64: 8, 3>}, {transform_indices = @transform_3, window_bounds = array<i64: 8, 256>}]} {
    %c0 = arith.constant 0 : index
    %c0_0 = arith.constant 0 : index
    %0 = vector.load %arg2[%c0, %c0_0] : memref<8x256xf32, #tpu.memory_space<vmem>>, vector<8x256xf32>
    %c0_1 = arith.constant 0 : index
    %c0_2 = arith.constant 0 : index
    %1 = vector.load %arg3[%c0_1, %c0_2] : memref<8x256xf32, #tpu.memory_space<vmem>>, vector<8x256xf32>
    %c0_3 = arith.constant 0 : index
    %c0_4 = arith.constant 0 : index
    %2 = vector.load %arg4[%c0_3, %c0_4] : memref<8x3xf32, #tpu.memory_space<vmem>>, vector<8x3xf32>
    %3 = vector.extract_strided_slice %2 {offsets = [0, 0], sizes = [8, 1], strides = [1, 1]} : vector<8x3xf32> to vector<8x1xf32>
    %4 = vector.broadcast %3 : vector<8x1xf32> to vector<8x256xf32>
    %5 = arith.mulf %0, %4 : vector<8x256xf32>
    %6 = vector.extract_strided_slice %2 {offsets = [0, 1], sizes = [8, 1], strides = [1, 1]} : vector<8x3xf32> to vector<8x1xf32>
    %7 = vector.broadcast %6 : vector<8x1xf32> to vector<8x256xf32>
    %8 = arith.mulf %1, %7 : vector<8x256xf32>
    %9 = arith.addf %5, %8 : vector<8x256xf32>
    %10 = vector.extract_strided_slice %2 {offsets = [0, 2], sizes = [8, 1], strides = [1, 1]} : vector<8x3xf32> to vector<8x1xf32>
    %11 = vector.broadcast %10 : vector<8x1xf32> to vector<8x256xf32>
    %12 = arith.addf %9, %11 : vector<8x256xf32>
    %c0_5 = arith.constant 0 : index
    %c0_6 = arith.constant 0 : index
    %13 = vector.load %arg5[%c0_5, %c0_6] : memref<8x256xf32, #tpu.memory_space<vmem>>, vector<8x256xf32>
    tpu.vector_store %arg5[%c0_5, %c0_6], %12 {strides = array<i32>} : memref<8x256xf32, #tpu.memory_space<vmem>>, vector<8x256xf32>,
    return
  }
  func.func @transform_0(%arg0: i32, %arg1: i32) -> (i32, i32) {
    %c0_i32 = arith.constant 0 : i32
    return %arg0, %arg1 : i32, i32
  }
  func.func @transform_1(%arg0: i32, %arg1: i32) -> (i32, i32) {
    %c0_i32 = arith.constant 0 : i32
    return %arg0, %arg1 : i32, i32
  }
  func.func @transform_2(%arg0: i32, %arg1: i32) -> (i32, i32) {
    %c0_i32 = arith.constant 0 : i32
    %c0_i32_0 = arith.constant 0 : i32
    return %arg0, %c0_i32 : i32, i32
  }
  func.func @transform_3(%arg0: i32, %arg1: i32) -> (i32, i32) {
    %c0_i32 = arith.constant 0 : i32
    return %arg0, %arg1 : i32, i32
  }
}

</mosaic_0001>

<llo_original>
// kernel: scale_skip_2d.1
$region0: #{scale_skip_2d.1}
  #allocation0 [shape = 'u32[]', space=smem, size = 0x4, offset = 0x4, fixed_abs, tag = 'smem constant byte address 0x4 - core index']
  #allocation1 [shape = 'u32[144,128]{1,0:T(1,128)}', space=vmem, size = 0x12000, scoped, tag = 'internal scratch']
  %s0 = inlined_call_operand.vmem [shape: f32[8,256], index: 0, kind: input, shape index: {}, may-alias: {0,3}]
  %s1 = inlined_call_operand.vmem [shape: f32[8,256], index: 1, kind: input, shape index: {}]
  %s2 = inlined_call_operand.vmem [shape: f32[8,3], index: 2, kind: input, shape index: {}]
  %s3 = inlined_call_operand.vmem [shape: f32[8,256], index: 3, kind: output, shape index: {}, may-alias: {0,3}]
  %s4 = sld [smem:[#allocation0]]
  $region22: #{scale_skip_2d.1} parent=0
    _
  %s6 = ssub.s32 1, %s4
  %s7 = scalar_select 0, %s6, %s4
  // Predicated region
  $region2: #{scale_skip_2d.1} parent=0 // pred_check
    _
  $region3: #{scale_skip_2d.1} parent=0 // pred_check_branch
    %9 = sbr.rel (0) target = $region5
  $region4: #{scale_skip_2d.1} parent=0 // pred_region
    _
  $region5: #{scale_skip_2d.1} parent=0 // pred_fallthru
    _
  // Predicated region
  $region6: #{scale_skip_2d.1} parent=0 // pred_check
    _
  $region7: #{scale_skip_2d.1} parent=0 // pred_check_branch
    %11 = sbr.rel (0) target = $region9
  $region8: #{scale_skip_2d.1} parent=0 // pred_region
    _
  $region9: #{scale_skip_2d.1} parent=0 // pred_fallthru
    _
  // Predicated region
  $region10: #{scale_skip_2d.1} parent=0 // pred_check
    _
  $region11: #{scale_skip_2d.1} parent=0 // pred_check_branch
    %13 = sbr.rel (0) target = $region13
  $region12: #{scale_skip_2d.1} parent=0 // pred_region
    _
  $region13: #{scale_skip_2d.1} parent=0 // pred_fallthru
    _
  %v14 = vld [vmem:[%s0] sm:$0xff]
  %v15 = vld [vmem:[%s0 + $0x8] sm:$0xff]
  %v16 = vld [vmem:[%s1] sm:$0xff]
  %v17 = vld [vmem:[%s1 + $0x8] sm:$0xff]
  %v18 = vld [vmem:[%s2] sm:$0xff]
  %20 = vset.pattern.permute.xlu0 0
  %21 = vperm.xlu0 %20, %v18
  %v22 = vpop.permute.xlu0 %21
  %v24 = vmul.f32 %v14, %v22
  %v25 = vmul.f32 %v15, %v22
  %26 = vset.pattern.permute.xlu0 1
  %27 = vperm.xlu0 %26, %v18
  %v28 = vpop.permute.xlu0 %27
  %v30 = vmul.f32 %v16, %v28
  %v31 = vmul.f32 %v17, %v28
  %v32 = vadd.f32 %v24, %v30
  %v33 = vadd.f32 %v25, %v31
  %34 = vset.pattern.permute.xlu0 2
  %35 = vperm.xlu0 %34, %v18
  %v36 = vpop.permute.xlu0 %35
  %v38 = vadd.f32 %v32, %v36
  %v39 = vadd.f32 %v33, %v36
  %40 = vst [vmem:[%s3] sm:$0xff] %v38
  %41 = vst [vmem:[%s3 + $0x8] sm:$0xff] %v39
  // Predicated region
  $region14: #{scale_skip_2d.1} parent=0 // pred_check
    _
  $region15: #{scale_skip_2d.1} parent=0 // pred_check_branch
    %43 = sbr.rel (0) target = $region17
  $region16: #{scale_skip_2d.1} parent=0 // pred_region
    _
  $region17: #{scale_skip_2d.1} parent=0 // pred_fallthru
    _
  // Predicated region
  $region18: #{scale_skip_2d.1} parent=0 // pred_check
    _
  $region19: #{scale_skip_2d.1} parent=0 // pred_check_branch
    %45 = sbr.rel (0) target = $region21
  $region20: #{scale_skip_2d.1} parent=0 // pred_region
    _
  $region21: #{scale_skip_2d.1} parent=0 // pred_fallthru
    _

</llo_original>
